<compile_context>
chip_gen: v5e
topology: v5e:2x2
jax: 0.10.0
libtpu: 0.0.40
codegen_flags: <defaults>
</compile_context>

<pallas_src>
import jax
import jax.numpy as jnp
import numpy as np
from jax.experimental import pallas as pl
from jax.experimental.pallas import tpu as pltpu


def _copy_kernel(x_ref, y_ref):
    # Default `_forward` body for the Pallas-backed subclass: identity.
    # Real invertible-flow math (affine coupling, 1x1 conv, ...) goes here.
    y_ref[...] = x_ref[...]


# ~4 MiB tiles: 2 inputs+outputs double-buffered = ~16 MiB VMEM, safe on every
# generation with the explicit 32 MiB scoped limit below (v5e default is only
# 16 MiB, so the limit must be raised when tiles are this big).
_TILE_BYTES = 4 * 1024 * 1024
_VMEM_LIMIT_BYTES = 32 * 1024 * 1024


def _sublane_quantum(dtype):
    # Minimum second-minor block multiple for full-vreg access:
    # f32 -> 8, bf16/f16 -> 16, int8/fp8 -> 32.
    itemsize = jnp.dtype(dtype).itemsize
    return {4: 8, 2: 16, 1: 32}.get(itemsize, 8)


def _pick_block_rows(rows, row_bytes, sub):
    """Sublane-aligned row block <= _TILE_BYTES, leaving >= 2 grid steps
    whenever the array is big enough to split (v7x has 2 TensorCores, and a
    1-step grid also disables BlockSpec pipelining)."""
    if rows <= sub:
        # Tiny arrays: full-extent block (block dim == array dim is always
        # legal, even when not sublane-aligned).
        return rows
    budget = max(1, _TILE_BYTES // max(1, row_bytes))
    br = min(rows, budget)
    br -= br % sub
    br = max(br, sub)
    if br >= rows:
        # Could cover everything in one block: split in two instead so both
        # TensorCores get work on v7x and DMA/compute overlap engages.
        half = (rows // 2) // sub * sub
        br = max(sub, half)
    return br


def _pallas_identity(x):
    """Tiled, auto-pipelined, lane-dense copy HBM -> VMEM -> HBM.

    Exact identity on the input (pure reshape folding, no padding); exists as
    the per-tile compute template for concrete invertible-flow subclasses.
    """
    orig_shape = x.shape
    dtype = x.dtype
    n = x.size
    if n == 0 or x.ndim == 0:
        return x

    itemsize = jnp.dtype(dtype).itemsize
    sub = _sublane_quantum(dtype)

    # ---- choose a 2-D view ------------------------------------------------
    lane = None
    if n % 128 == 0:
        # Lane-dense fast path: last dim a multiple of 128 (unmasked vst),
        # preferring widths whose row count is also sublane-aligned.
        for cand in (2048, 1024, 512, 256, 128):
            if n % cand == 0 and (n // cand) % sub == 0:
                lane = cand
                break
        if lane is None:
            for cand in (2048, 1024, 512, 256, 128):
                if n % cand == 0:
                    lane = cand
                    break
    if lane is None:
        # Ragged total size: DO NOT pad+slice (that would double HBM traffic).
        # Use the original minor dim as a full (hence legal) block; the cdiv
        # grid's partial last row block is masked by Pallas.
        lane = orig_shape[-1] if x.ndim >= 2 else n

    rows = n // lane
    x2d = x.reshape(rows, lane)

    # ---- row block + grid (cdiv: no need for br to divide rows) -----------
    br = _pick_block_rows(rows, lane * itemsize, sub)
    grid = (pl.cdiv(rows, br),)

    y2d = pl.pallas_call(
        _copy_kernel,
        out_shape=jax.ShapeDtypeStruct((rows, lane), dtype),
        grid=grid,
        in_specs=[pl.BlockSpec((br, lane), lambda i: (i, 0))],
        out_specs=pl.BlockSpec((br, lane), lambda i: (i, 0)),
        # Output aliases the input buffer: no separate HBM allocation, and
        # real coupling subclasses can skip writing the pass-through half.
        input_output_aliases={0: 0},
        compiler_params=pltpu.CompilerParams(
            # Independent row tiles.  TODO(synk): on v7x, switching this axis
            # to pltpu.CORE_PARALLEL guarantees 2-TensorCore sharding; kept as
            # "parallel" here for portability across v5e/v6e/v7x.
            dimension_semantics=("parallel",),
            vmem_limit_bytes=_VMEM_LIMIT_BYTES,
        ),
        cost_estimate=pl.CostEstimate(
            flops=0,
            transcendentals=0,
            bytes_accessed=2 * n * itemsize,
        ),
    )(x2d)

    return y2d.reshape(orig_shape)


class InvertibleModule:
    """JAX/Pallas port of the PyTorch InvertibleModule base class.

    forward(x, condition)  -> _forward(x, condition)[0]
    backward(x, condition) -> _backward(x, condition)[0]

    `_forward`/`_backward` are abstract in the reference; the base-class
    default here is a zero-cost pass-through (y = x, logdet = 0) -- no Pallas
    copy for a pure identity.
    """

    def __init__(self, input_size, condition_size=None, hidden_size=None):
        self.input_size = input_size
        self.condition_size = condition_size
        self.hidden_size = hidden_size

    # ---- public API (mirrors nn.Module.forward / .backward) ----
    def forward(self, x, condition=None):
        return self._forward(x, condition)[0]

    def backward(self, x, condition=None):
        return self._backward(x, condition)[0]

    # ---- default pass-through (abstract in PyTorch) ----
    def _forward(self, x, condition=None):
        return x, self._zero_logdet(x)

    def _backward(self, x, condition=None):
        return x, self._zero_logdet(x)

    @staticmethod
    def _zero_logdet(x):
        # Flow convention: per-sample log|det J|, shape (batch,).
        if getattr(x, "ndim", 0) >= 1:
            return jnp.zeros((x.shape[0],), dtype=jnp.float32)
        return jnp.zeros((), dtype=jnp.float32)


class PallasIdentityFlow(InvertibleModule):
    """Concrete subclass template: `_forward` runs the tiled Pallas kernel.

    Real flow layers keep this structure and replace `_copy_kernel`'s identity
    body with per-tile coupling / 1x1-conv math plus an in-kernel logdet
    accumulator (pl.when init on the first grid step, finalize on the last).
    """

    def _forward(self, x, condition=None):
        y = _pallas_identity(x)
        return y, self._zero_logdet(x)

    def _backward(self, x, condition=None):
        y = _pallas_identity(x)
        return y, self._zero_logdet(x)


if __name__ == "__main__":
    key = jax.random.PRNGKey(0)
    # NCHW input consistent with an invertible-flow module over images.
    x = jax.random.normal(key, (2, 4, 16, 16), dtype=jnp.float32)
    x_host = np.asarray(x)  # host copy for the check (output may alias input)

    # Base class: zero-cost pass-through forward.
    base = InvertibleModule(input_size=4, condition_size=None, hidden_size=32)
    y_base = base.forward(x)
    assert y_base.shape == x.shape and y_base.dtype == x.dtype

    # Pallas-backed concrete subclass: lane-dense fast path (2048 % 128 == 0).
    module = PallasIdentityFlow(input_size=4, condition_size=None, hidden_size=32)
    y = jax.block_until_ready(module.forward(x))
    assert y.shape == x.shape and y.dtype == x.dtype
    assert bool(jnp.allclose(y, jnp.asarray(x_host))), "identity forward mismatch"

    # Ragged size (105 elements, not 128-divisible): exercises the no-pad
    # fallback path with a masked partial row block.
    x2 = jax.random.normal(jax.random.PRNGKey(1), (3, 5, 7), dtype=jnp.float32)
    x2_host = np.asarray(x2)
    y2 = jax.block_until_ready(module.forward(x2))
    assert y2.shape == x2.shape and y2.dtype == x2.dtype
    assert bool(jnp.allclose(y2, jnp.asarray(x2_host))), "ragged forward mismatch"

    print("KERNEL_OK")
</pallas_src>

<mosaic_0001>
module attributes {stable_mosaic.version = 11 : i64} {
  func.func @_copy_kernel(%arg0: i32, %arg1: memref<8x256xf32, #tpu.memory_space<vmem>>, %arg2: memref<8x256xf32, #tpu.memory_space<vmem>>) attributes {dimension_semantics = [#tpu.dimension_semantics<parallel>], iteration_bounds = array<i64: 1>, scalar_prefetch = 0 : i64, scratch_operands = 0 : i64, tpu.core_type = #tpu.core_type<tc>, window_params = [{transform_indices = @transform_0, window_bounds = array<i64: 8, 256>}, {transform_indices = @transform_1, window_bounds = array<i64: 8, 256>}]} {
    %c0 = arith.constant 0 : index
    %c0_0 = arith.constant 0 : index
    %0 = vector.load %arg1[%c0, %c0_0] : memref<8x256xf32, #tpu.memory_space<vmem>>, vector<8x256xf32>
    %c0_1 = arith.constant 0 : index
    %c0_2 = arith.constant 0 : index
    %1 = vector.load %arg2[%c0_1, %c0_2] : memref<8x256xf32, #tpu.memory_space<vmem>>, vector<8x256xf32>
    tpu.vector_store %arg2[%c0_1, %c0_2], %0 {strides = array<i32>} : memref<8x256xf32, #tpu.memory_space<vmem>>, vector<8x256xf32>,
    return
  }
  func.func @transform_0(%arg0: i32) -> (i32, i32) {
    %c0_i32 = arith.constant 0 : i32
    %c0_i32_0 = arith.constant 0 : i32
    return %arg0, %c0_i32 : i32, i32
  }
  func.func @transform_1(%arg0: i32) -> (i32, i32) {
    %c0_i32 = arith.constant 0 : i32
    %c0_i32_0 = arith.constant 0 : i32
    return %arg0, %c0_i32 : i32, i32
  }
}

</mosaic_0001>

<llo_original>
// kernel: tpu_custom_call.1
$region0: #{tpu_custom_call.1}
  #allocation0 [shape = 'u32[]', space=smem, size = 0x4, offset = 0x4, fixed_abs, tag = 'smem constant byte address 0x4 - core index']
  #allocation1 [shape = 'u32[72,128]{1,0:T(1,128)}', space=vmem, size = 0x9000, scoped, tag = 'internal scratch']
  %s0 = inlined_call_operand.hbm [shape: f32[8,256], index: 0, kind: input, shape index: {}, may-alias: {0,1}]
  %s1 = inlined_call_operand.hbm [shape: f32[8,256], index: 1, kind: output, shape index: {}, may-alias: {0,1}]
  %s2 = sld [smem:[#allocation0]]
  $region18: #{tpu_custom_call.1} parent=0
    _
  %s4 = ssub.s32 1, %s2
  %s5 = scalar_select 0, %s4, %s2
  $region1: #{tpu_custom_call.1} parent=0
    #allocation2 [shape = 'u8[8192]{0}', space=vmem, size = 0x2000, scoped, tag = 'input window, operand 0, single buffered']
    #allocation3 [shape = 's32[1]{0}', space=sflag, size = 0x4, scoped, tag = 'scoped memory for tpu_custom_call.1']
    #allocation4 [shape = 's32[1]{0}', space=sflag, size = 0x4, scoped, tag = 'scoped memory for tpu_custom_call.1']
    #allocation5 [shape = 'u8[8192]{0}', space=vmem, size = 0x2000, scoped, tag = 'output window, operand 0, single buffered']
    %6 = vsyncpa [#allocation3], 0
    %7 = vsyncpa [#allocation4], 0
    // Predicated region
    $region2: #{tpu_custom_call.1} parent=1 // pred_check
      _
    $region3: #{tpu_custom_call.1} parent=1 // pred_check_branch
      %9 = sbr.rel (0) target = $region5
    $region4: #{tpu_custom_call.1} parent=1 // pred_region
      %11 = vsyncadd [#allocation3], 0
      %s13 = sshll.u32 %s0, 4
      %s14 = int_to_ptr.hbm [resolvable:$true] %s13
      %s15 = sshll.u32 [#allocation2], 4
      %s16 = int_to_ptr.vmem [resolvable:$true] %s15
      %18 = dma.hbm_to_vmem [thread:$0]  %s14, 256, %s16, [#allocation3]
    $region5: #{tpu_custom_call.1} parent=1 // pred_fallthru
      _
    // Predicated region
    $region6: #{tpu_custom_call.1} parent=1 // pred_check
      _
    $region7: #{tpu_custom_call.1} parent=1 // pred_check_branch
      %20 = sbr.rel (0) target = $region9
    $region8: #{tpu_custom_call.1} parent=1 // pred_region
      %22 = dma.done [#allocation3], 256
    $region9: #{tpu_custom_call.1} parent=1 // pred_fallthru
      _
    %v23 = vld [vmem:[#allocation2] sm:$0xff]
    %v24 = vld [vmem:[#allocation2 + $0x8] sm:$0xff]
    %25 = vst [vmem:[#allocation5] sm:$0xff] %v23
    %26 = vst [vmem:[#allocation5 + $0x8] sm:$0xff] %v24
    // Predicated region
    $region10: #{tpu_custom_call.1} parent=1 // pred_check
      _
    $region11: #{tpu_custom_call.1} parent=1 // pred_check_branch
      %28 = sbr.rel (0) target = $region13
    $region12: #{tpu_custom_call.1} parent=1 // pred_region
      %30 = vsyncadd [#allocation4], 0
      %s32 = sshll.u32 [#allocation5], 4
      %s33 = int_to_ptr.vmem [resolvable:$true] %s32
      %s34 = sshll.u32 %s1, 4
      %s35 = int_to_ptr.hbm [resolvable:$true] %s34
      %37 = dma.vmem_to_hbm [thread:$0]  %s33, 256, %s35, [#allocation4]
    $region13: #{tpu_custom_call.1} parent=1 // pred_fallthru
      _
    // Predicated region
    $region14: #{tpu_custom_call.1} parent=1 // pred_check
      _
    $region15: #{tpu_custom_call.1} parent=1 // pred_check_branch
      %39 = sbr.rel (0) target = $region17
    $region16: #{tpu_custom_call.1} parent=1 // pred_region
      %41 = dma.done [#allocation4], 256
    $region17: #{tpu_custom_call.1} parent=1 // pred_fallthru
      _
    %42 = vsyncpa [#allocation3], 1
    %43 = vsyncpa [#allocation4], 1

</llo_original>
